<compile_context>
chip_gen: v6e
topology: v6e:2x2x1
jax: 0.10.0
libtpu: 0.0.40
codegen_flags: <defaults>
</compile_context>

<pallas_src>
import functools

import jax
import jax.numpy as jnp
from jax.experimental import pallas as pl
from jax.experimental.pallas import tpu as pltpu

GAMMA = 1.0
ALPHA = 0.5

_C1 = 0.01 ** 2                    # (K1 * data_range)^2, data_range = 1
_C2 = 0.03 ** 2                    # (K2 * data_range)^2
_WIN = 3
_NP = _WIN * _WIN                  # pixels per window (9)
_COV_NORM = _NP / (_NP - 1.0)      # skimage use_sample_covariance=True
# 1/np window normalisation folded into the constants (raw box sums S*):
#   a1*np^2      = 2*Sx*Sy + C1*np^2
#   b1*np^2      = Sx^2 + Sy^2 + C1*np^2
#   a2*np*(np-1) = 2*(np*Sxy - Sx*Sy) + C2*np*(np-1)
#   b2*np*(np-1) = np*(Sxx+Syy) - Sx^2 - Sy^2 + C2*np*(np-1)
# and the np^2 / np*(np-1) factors cancel in (a1*a2)/(b1*b2).
_C1N = _C1 * _NP * _NP
_C2N = _C2 * _NP * (_NP - 1)
_NPF = float(_NP)


def _round_up(x, m):
    return ((x + m - 1) // m) * m


def _vmem_capacity_bytes():
    """Per-core VMEM capacity, best effort (conservative fallback)."""
    try:
        return int(pltpu.get_tpu_info().vmem_capacity_bytes)
    except Exception:
        pass
    try:
        kind = jax.devices()[0].device_kind.lower()
    except Exception:
        kind = ""
    if any(t in kind for t in ("v4", "v5", "v6")):
        return 128 * 1024 * 1024
    return 64 * 1024 * 1024            # v7x / unknown: be conservative


def _tensorcores_per_chip():
    """2 on megacore / dual-TC parts (v4, v5p, v7x), else 1."""
    try:
        kind = jax.devices()[0].device_kind.lower()
    except Exception:
        return 1
    if any(t in kind for t in ("v4", "v5p", "v7", "7x")):
        return 2
    return 1


def _loss_kernel(mask_ref, g1_ref, g2_ref, fg1_ref, G1f_ref, G2f_ref, acc_ref,
                 *, W, HW, TB, G_inner, NC, NC_pad,
                 k_mse, k_reg, k_ssim):
    """One step: TB (n, c) slices, each flattened to an H*W lane-dense row."""
    i = pl.program_id(1)                       # reduction ("arbitrary") axis

    # Single resident (1, 8, HW) output block used as a per-lane vector
    # accumulator; the one cross-lane reduction happens in the JAX glue.
    @pl.when(i == 0)
    def _init():
        acc_ref[...] = jnp.zeros_like(acc_ref)

    # Cast after the DMA so sub-f32 inputs move at native width (no-op for f32).
    g1 = g1_ref[...].astype(jnp.float32)       # (TB, HW)
    g2 = g2_ref[...].astype(jnp.float32)
    fg1 = fg1_ref[...].astype(jnp.float32)
    G1f = G1f_ref[...].astype(jnp.float32)
    G2f = G2f_ref[...].astype(jnp.float32)

    # --- MSE / regulariser part (elementwise, lane dense) --------------------
    d = fg1 - g2
    r = d - G1f + G2f
    base = k_mse * (d * d) + k_reg * (r * r)   # loss constants folded in

    # --- SSIM map on the flat (slice, H*W) layout -----------------------------
    # Centred 3x3 box sums from symmetric pltpu.roll lane rotations (XLU);
    # border / row-wrapped centres give bounded garbage and are masked out.
    def box3(x):
        row = x + pltpu.roll(x, 1, axis=1) + pltpu.roll(x, HW - 1, axis=1)
        return row + pltpu.roll(row, W, axis=1) + pltpu.roll(row, HW - W, axis=1)

    sx = box3(g1)
    sy = box3(g2)
    spp = box3(g1 * g1 + g2 * g2)              # merged sxx + syy (box3 is linear)
    sxy = box3(g1 * g2)

    sxsy = sx * sy
    sq = sx * sx + sy * sy
    num = (2.0 * sxsy + _C1N) * (2.0 * (_NPF * sxy - sxsy) + _C2N)
    den = (sq + _C1N) * (_NPF * spp - sq + _C2N)
    # den >= C1N*C2N > 0 everywhere, so the fast EUP reciprocal is safe.
    s = num * pl.reciprocal(den, approx=True)

    sm = s * mask_ref[...]                     # (TB, HW), valid-centre mask

    def _accum(ssim_part):
        c = base - k_ssim * ssim_part          # (TB, HW)
        # Exact sublane-group fold -> pure VPU adds, tiny accumulator RMW.
        acc_ref[0] += jnp.sum(c.reshape(TB // 8, 8, HW), axis=0)

    if NC_pad == NC:                           # static: no padded slices at all
        _accum(sm)
    else:
        # Only blocks with index >= NC // TB contain padded rows; everyone
        # else takes the unmasked fast path. (base is exactly 0 on padded rows
        # since the padding is zeros, so only the SSIM term needs masking.)
        first_pad_blk = NC // TB
        blk = pl.program_id(0) * G_inner + i

        @pl.when(blk < first_pad_blk)
        def _fast():
            _accum(sm)

        @pl.when(blk >= first_pad_blk)
        def _masked():
            rows = blk * TB + jax.lax.broadcasted_iota(jnp.int32, (TB, 1), 0)
            _accum(sm * (rows < NC).astype(jnp.float32))


def regularized_loss(g1, g2, fg1, G1f, G2f, gamma=GAMMA, alpha=ALPHA):
    """Pallas implementation of RegularizedLoss.forward (inputs NCHW).

    gamma / alpha are assumed to be static Python numbers (they are fixed at
    module construction time in the original nn.Module)."""
    N, C, H, W = g1.shape
    NC, HW = N * C, H * W

    # --- generation-aware tile sizing ----------------------------------------
    vmem_cap = _vmem_capacity_bytes()
    if vmem_cap >= 96 * 1024 * 1024:           # 128 MiB parts: v4/v5e/v5p/v6e
        budget, vmem_limit, tb_max = 48 << 20, 96 << 20, 2048
    else:                                      # v7x (64 MiB) or unknown
        budget, vmem_limit, tb_max = 16 << 20, 32 << 20, 512

    # ~32 live (TB, HW) f32 tiles in flight (5 double-buffered input streams
    # plus SSIM temporaries); accumulator is now a tiny (8, HW) block.
    tb_cap = max(8, (budget // (32 * HW * 4)) // 8 * 8)
    TB = int(min(tb_cap, _round_up(NC, 8), tb_max))   # slices/block, mult. of 8

    tc = _tensorcores_per_chip()
    n_blocks = pl.cdiv(NC, TB)
    G_outer = tc if (tc > 1 and n_blocks >= tc) else 1   # megacore split only
    n_blocks = _round_up(n_blocks, G_outer)              # on dual-TC parts
    G_inner = n_blocks // G_outer
    NC_pad = n_blocks * TB

    # Best effort: make sure the scoped limit covers the per-step working set.
    est_ws = 32 * TB * HW * 4
    vmem_limit = int(min(max(vmem_limit, 2 * est_ws),
                         max(vmem_cap - (8 << 20), 32 << 20)))
    # TODO(synk): add a lane-axis (HW) tiling path with a +/-W halo for very
    # large H*W; at TB=8 the working set can still exceed VMEM (esp. v7x).

    def prep(x):
        x = x.reshape(NC, HW)                  # free bitcast, lane dense
        if NC_pad != NC:
            x = jnp.pad(x, ((0, NC_pad - NC), (0, 0)))
        return x

    args = [prep(a) for a in (g1, g2, fg1, G1f, G2f)]

    # Valid-centre mask for the centred 3x3 window on the flat layout:
    # exactly (H-2)*(W-2) interior centres per slice.
    jj = jnp.arange(HW, dtype=jnp.int32)
    hh, ww = jj // W, jj % W
    lane_mask = (((hh >= 1) & (hh <= H - 2) & (ww >= 1) & (ww <= W - 2))
                 .astype(jnp.float32).reshape(1, HW))

    # Loss constants folded into the per-pixel accumulation:
    #   sum(acc) = mse + gamma*reg - alpha*mssim ;  loss = alpha + sum(acc)
    k_mse = 1.0 / (NC * HW)
    k_reg = gamma / (NC * HW)
    k_ssim = alpha / (NC * (H - 2) * (W - 2))

    kernel = functools.partial(_loss_kernel, W=W, HW=HW, TB=TB,
                               G_inner=G_inner, NC=NC, NC_pad=NC_pad,
                               k_mse=k_mse, k_reg=k_reg, k_ssim=k_ssim)

    data_spec = pl.BlockSpec((TB, HW), lambda o, i: (o * G_inner + i, 0))
    acc_spec = pl.BlockSpec((1, 8, HW), lambda o, i: (o, 0, 0))

    acc = pl.pallas_call(
        kernel,
        out_shape=jax.ShapeDtypeStruct((G_outer, 8, HW), jnp.float32),
        grid=(G_outer, G_inner),
        in_specs=[pl.BlockSpec((1, HW), lambda o, i: (0, 0))] + [data_spec] * 5,
        out_specs=acc_spec,
        compiler_params=pltpu.CompilerParams(
            dimension_semantics=("parallel", "arbitrary"),
            vmem_limit_bytes=vmem_limit),
    )(lane_mask, *args)

    # Single cross-lane reduction + scalar combine in plain JAX glue.
    return alpha + jnp.sum(acc)


# ----------------------- plain-JAX reference ------------------------------
def _regularized_loss_ref(g1, g2, fg1, G1f, G2f, gamma=GAMMA, alpha=ALPHA):
    mse = jnp.mean((fg1 - g2) ** 2)
    reg = jnp.mean((fg1 - g2 - G1f + G2f) ** 2)

    N, C, H, W = g1.shape
    x = g1.reshape(N * C, H, W).astype(jnp.float32)
    y = g2.reshape(N * C, H, W).astype(jnp.float32)

    def box3(a):
        row = a[:, :, 0:W - 2] + a[:, :, 1:W - 1] + a[:, :, 2:W]
        return row[:, 0:H - 2, :] + row[:, 1:H - 1, :] + row[:, 2:H, :]

    ux = box3(x) / _NP
    uy = box3(y) / _NP
    uxx = box3(x * x) / _NP
    uyy = box3(y * y) / _NP
    uxy = box3(x * y) / _NP
    vx = _COV_NORM * (uxx - ux * ux)
    vy = _COV_NORM * (uyy - uy * uy)
    vxy = _COV_NORM * (uxy - ux * uy)
    s = ((2 * ux * uy + _C1) * (2 * vxy + _C2)) / \
        ((ux * ux + uy * uy + _C1) * (vx + vy + _C2))
    ssim_loss = 1.0 - jnp.mean(s)
    return mse + gamma * reg + alpha * ssim_loss


if __name__ == "__main__":
    key = jax.random.PRNGKey(0)
    k1, k2, k3, k4, k5 = jax.random.split(key, 5)
    N, C, H, W = 2, 4, 16, 16          # NCHW, small synthetic shapes
    shape = (N, C, H, W)
    # values in [0, 1], consistent with data_range=1 in the ssim call
    g1 = jax.random.uniform(k1, shape, dtype=jnp.float32)
    g2 = jax.random.uniform(k2, shape, dtype=jnp.float32)
    fg1 = jax.random.uniform(k3, shape, dtype=jnp.float32)
    G1f = jax.random.uniform(k4, shape, dtype=jnp.float32)
    G2f = jax.random.uniform(k5, shape, dtype=jnp.float32)

    loss = jax.block_until_ready(regularized_loss(g1, g2, fg1, G1f, G2f))
    ref = jax.block_until_ready(_regularized_loss_ref(g1, g2, fg1, G1f, G2f))
    assert jnp.allclose(loss, ref, rtol=2e-3, atol=1e-5), (loss, ref)

    print("KERNEL_OK")
</pallas_src>

<mosaic_0001>
module attributes {stable_mosaic.version = 11 : i64} {
  func.func @_loss_kernel(%arg0: i32, %arg1: i32, %arg2: memref<1x256xf32, #tpu.memory_space<vmem>>, %arg3: memref<8x256xf32, #tpu.memory_space<vmem>>, %arg4: memref<8x256xf32, #tpu.memory_space<vmem>>, %arg5: memref<8x256xf32, #tpu.memory_space<vmem>>, %arg6: memref<8x256xf32, #tpu.memory_space<vmem>>, %arg7: memref<8x256xf32, #tpu.memory_space<vmem>>, %arg8: memref<1x8x256xf32, #tpu.memory_space<vmem>>) attributes {dimension_semantics = [#tpu.dimension_semantics<parallel>, #tpu.dimension_semantics<arbitrary>], iteration_bounds = array<i64: 1, 1>, scalar_prefetch = 0 : i64, scratch_operands = 0 : i64, tpu.core_type = #tpu.core_type<tc>, window_params = [{pipeline_mode = #tpu.pipeline_mode<synchronous>, transform_indices = @transform_0, window_bounds = array<i64: 1, 256>}, {transform_indices = @transform_1, window_bounds = array<i64: 8, 256>}, {transform_indices = @transform_2, window_bounds = array<i64: 8, 256>}, {transform_indices = @transform_3, window_bounds = array<i64: 8, 256>}, {transform_indices = @transform_4, window_bounds = array<i64: 8, 256>}, {transform_indices = @transform_5, window_bounds = array<i64: 8, 256>}, {transform_indices = @transform_6, window_bounds = array<i64: 1, 8, 256>}]} {
    %c0_i32 = arith.constant 0 : i32
    %0 = arith.cmpi eq, %arg1, %c0_i32 : i32
    %1 = arith.extui %0 : i1 to i32
    %c0_i32_0 = arith.constant 0 : i32
    %2 = arith.cmpi ne, %1, %c0_i32_0 : i32
    scf.if %2 {
      %cst_41 = arith.constant 0.000000e+00 : f32
      %94 = vector.broadcast %cst_41 : f32 to vector<1x8x256xf32>
      %c0_42 = arith.constant 0 : index
      %c0_43 = arith.constant 0 : index
      %c0_44 = arith.constant 0 : index
      %95 = vector.load %arg8[%c0_42, %c0_43, %c0_44] : memref<1x8x256xf32, #tpu.memory_space<vmem>>, vector<1x8x256xf32>
      tpu.vector_store %arg8[%c0_42, %c0_43, %c0_44], %94 {strides = array<i32>} : memref<1x8x256xf32, #tpu.memory_space<vmem>>, vector<1x8x256xf32>,
    } else {
    }
    %c0 = arith.constant 0 : index
    %c0_1 = arith.constant 0 : index
    %3 = vector.load %arg3[%c0, %c0_1] : memref<8x256xf32, #tpu.memory_space<vmem>>, vector<8x256xf32>
    %c0_2 = arith.constant 0 : index
    %c0_3 = arith.constant 0 : index
    %4 = vector.load %arg4[%c0_2, %c0_3] : memref<8x256xf32, #tpu.memory_space<vmem>>, vector<8x256xf32>
    %c0_4 = arith.constant 0 : index
    %c0_5 = arith.constant 0 : index
    %5 = vector.load %arg5[%c0_4, %c0_5] : memref<8x256xf32, #tpu.memory_space<vmem>>, vector<8x256xf32>
    %c0_6 = arith.constant 0 : index
    %c0_7 = arith.constant 0 : index
    %6 = vector.load %arg6[%c0_6, %c0_7] : memref<8x256xf32, #tpu.memory_space<vmem>>, vector<8x256xf32>
    %c0_8 = arith.constant 0 : index
    %c0_9 = arith.constant 0 : index
    %7 = vector.load %arg7[%c0_8, %c0_9] : memref<8x256xf32, #tpu.memory_space<vmem>>, vector<8x256xf32>
    %8 = arith.subf %5, %4 : vector<8x256xf32>
    %9 = arith.subf %8, %6 : vector<8x256xf32>
    %10 = arith.addf %9, %7 : vector<8x256xf32>
    %11 = arith.mulf %8, %8 : vector<8x256xf32>
    %cst = arith.constant 4.8828125E-4 : f32
    %12 = vector.broadcast %cst : f32 to vector<8x256xf32>
    %13 = arith.mulf %12, %11 : vector<8x256xf32>
    %14 = arith.mulf %10, %10 : vector<8x256xf32>
    %cst_10 = arith.constant 4.8828125E-4 : f32
    %15 = vector.broadcast %cst_10 : f32 to vector<8x256xf32>
    %16 = arith.mulf %15, %14 : vector<8x256xf32>
    %17 = arith.addf %13, %16 : vector<8x256xf32>
    %c1_i32 = arith.constant 1 : i32
    %18 = tpu.dynamic_rotate %3 by %c1_i32 dim 1 : vector<8x256xf32>, i32 -> vector<8x256xf32>
    %19 = arith.addf %3, %18 : vector<8x256xf32>
    %c255_i32 = arith.constant 255 : i32
    %20 = tpu.dynamic_rotate %3 by %c255_i32 dim 1 : vector<8x256xf32>, i32 -> vector<8x256xf32>
    %21 = arith.addf %19, %20 : vector<8x256xf32>
    %c16_i32 = arith.constant 16 : i32
    %22 = tpu.dynamic_rotate %21 by %c16_i32 dim 1 : vector<8x256xf32>, i32 -> vector<8x256xf32>
    %23 = arith.addf %21, %22 : vector<8x256xf32>
    %c240_i32 = arith.constant 240 : i32
    %24 = tpu.dynamic_rotate %21 by %c240_i32 dim 1 : vector<8x256xf32>, i32 -> vector<8x256xf32>
    %25 = arith.addf %23, %24 : vector<8x256xf32>
    %c1_i32_11 = arith.constant 1 : i32
    %26 = tpu.dynamic_rotate %4 by %c1_i32_11 dim 1 : vector<8x256xf32>, i32 -> vector<8x256xf32>
    %27 = arith.addf %4, %26 : vector<8x256xf32>
    %c255_i32_12 = arith.constant 255 : i32
    %28 = tpu.dynamic_rotate %4 by %c255_i32_12 dim 1 : vector<8x256xf32>, i32 -> vector<8x256xf32>
    %29 = arith.addf %27, %28 : vector<8x256xf32>
    %c16_i32_13 = arith.constant 16 : i32
    %30 = tpu.dynamic_rotate %29 by %c16_i32_13 dim 1 : vector<8x256xf32>, i32 -> vector<8x256xf32>
    %31 = arith.addf %29, %30 : vector<8x256xf32>
    %c240_i32_14 = arith.constant 240 : i32
    %32 = tpu.dynamic_rotate %29 by %c240_i32_14 dim 1 : vector<8x256xf32>, i32 -> vector<8x256xf32>
    %33 = arith.addf %31, %32 : vector<8x256xf32>
    %34 = arith.mulf %3, %3 : vector<8x256xf32>
    %35 = arith.mulf %4, %4 : vector<8x256xf32>
    %36 = arith.addf %34, %35 : vector<8x256xf32>
    %c1_i32_15 = arith.constant 1 : i32
    %37 = tpu.dynamic_rotate %36 by %c1_i32_15 dim 1 : vector<8x256xf32>, i32 -> vector<8x256xf32>
    %38 = arith.addf %36, %37 : vector<8x256xf32>
    %c255_i32_16 = arith.constant 255 : i32
    %39 = tpu.dynamic_rotate %36 by %c255_i32_16 dim 1 : vector<8x256xf32>, i32 -> vector<8x256xf32>
    %40 = arith.addf %38, %39 : vector<8x256xf32>
    %c16_i32_17 = arith.constant 16 : i32
    %41 = tpu.dynamic_rotate %40 by %c16_i32_17 dim 1 : vector<8x256xf32>, i32 -> vector<8x256xf32>
    %42 = arith.addf %40, %41 : vector<8x256xf32>
    %c240_i32_18 = arith.constant 240 : i32
    %43 = tpu.dynamic_rotate %40 by %c240_i32_18 dim 1 : vector<8x256xf32>, i32 -> vector<8x256xf32>
    %44 = arith.addf %42, %43 : vector<8x256xf32>
    %45 = arith.mulf %3, %4 : vector<8x256xf32>
    %c1_i32_19 = arith.constant 1 : i32
    %46 = tpu.dynamic_rotate %45 by %c1_i32_19 dim 1 : vector<8x256xf32>, i32 -> vector<8x256xf32>
    %47 = arith.addf %45, %46 : vector<8x256xf32>
    %c255_i32_20 = arith.constant 255 : i32
    %48 = tpu.dynamic_rotate %45 by %c255_i32_20 dim 1 : vector<8x256xf32>, i32 -> vector<8x256xf32>
    %49 = arith.addf %47, %48 : vector<8x256xf32>
    %c16_i32_21 = arith.constant 16 : i32
    %50 = tpu.dynamic_rotate %49 by %c16_i32_21 dim 1 : vector<8x256xf32>, i32 -> vector<8x256xf32>
    %51 = arith.addf %49, %50 : vector<8x256xf32>
    %c240_i32_22 = arith.constant 240 : i32
    %52 = tpu.dynamic_rotate %49 by %c240_i32_22 dim 1 : vector<8x256xf32>, i32 -> vector<8x256xf32>
    %53 = arith.addf %51, %52 : vector<8x256xf32>
    %54 = arith.mulf %25, %33 : vector<8x256xf32>
    %55 = arith.mulf %25, %25 : vector<8x256xf32>
    %56 = arith.mulf %33, %33 : vector<8x256xf32>
    %57 = arith.addf %55, %56 : vector<8x256xf32>
    %cst_23 = arith.constant 2.000000e+00 : f32
    %58 = vector.broadcast %cst_23 : f32 to vector<8x256xf32>
    %59 = arith.mulf %58, %54 : vector<8x256xf32>
    %cst_24 = arith.constant 8.100000e-03 : f32
    %60 = vector.broadcast %cst_24 : f32 to vector<8x256xf32>
    %61 = arith.addf %59, %60 : vector<8x256xf32>
    %cst_25 = arith.constant 9.000000e+00 : f32
    %62 = vector.broadcast %cst_25 : f32 to vector<8x256xf32>
    %63 = arith.mulf %62, %53 : vector<8x256xf32>
    %64 = arith.subf %63, %54 : vector<8x256xf32>
    %cst_26 = arith.constant 2.000000e+00 : f32
    %65 = vector.broadcast %cst_26 : f32 to vector<8x256xf32>
    %66 = arith.mulf %65, %64 : vector<8x256xf32>
    %cst_27 = arith.constant 6.480000e-02 : f32
    %67 = vector.broadcast %cst_27 : f32 to vector<8x256xf32>
    %68 = arith.addf %66, %67 : vector<8x256xf32>
    %69 = arith.mulf %61, %68 : vector<8x256xf32>
    %cst_28 = arith.constant 8.100000e-03 : f32
    %70 = vector.broadcast %cst_28 : f32 to vector<8x256xf32>
    %71 = arith.addf %57, %70 : vector<8x256xf32>
    %cst_29 = arith.constant 9.000000e+00 : f32
    %72 = vector.broadcast %cst_29 : f32 to vector<8x256xf32>
    %73 = arith.mulf %72, %44 : vector<8x256xf32>
    %74 = arith.subf %73, %57 : vector<8x256xf32>
    %cst_30 = arith.constant 6.480000e-02 : f32
    %75 = vector.broadcast %cst_30 : f32 to vector<8x256xf32>
    %76 = arith.addf %74, %75 : vector<8x256xf32>
    %77 = arith.mulf %71, %76 : vector<8x256xf32>
    %78 = tpu.reciprocal %77 {approx = true} : vector<8x256xf32> -> vector<8x256xf32>
    %79 = arith.mulf %69, %78 : vector<8x256xf32>
    %c0_31 = arith.constant 0 : index
    %c0_32 = arith.constant 0 : index
    %80 = vector.load %arg2[%c0_31, %c0_32] : memref<1x256xf32, #tpu.memory_space<vmem>>, vector<1x256xf32>
    %81 = vector.broadcast %80 : vector<1x256xf32> to vector<8x256xf32>
    %82 = arith.mulf %79, %81 : vector<8x256xf32>
    %cst_33 = arith.constant 3.18877544E-4 : f32
    %83 = vector.broadcast %cst_33 : f32 to vector<8x256xf32>
    %84 = arith.mulf %83, %82 : vector<8x256xf32>
    %85 = arith.subf %17, %84 : vector<8x256xf32>
    %c0_34 = arith.constant 0 : index
    %c0_35 = arith.constant 0 : index
    %c0_36 = arith.constant 0 : index
    %86 = vector.load %arg8[%c0_34, %c0_35, %c0_36] : memref<1x8x256xf32, #tpu.memory_space<vmem>>, vector<1x8x256xf32>
    %87 = vector.shape_cast %86 : vector<1x8x256xf32> to vector<8x256xf32>
    %88 = vector.shape_cast %85 : vector<8x256xf32> to vector<1x8x256xf32>
    %cst_37 = arith.constant dense<0.000000e+00> : vector<8x256xf32>
    %89 = vector.multi_reduction <add>, %88, %cst_37 [0] : vector<1x8x256xf32> to vector<8x256xf32>
    %90 = arith.addf %87, %89 : vector<8x256xf32>
    %c0_38 = arith.constant 0 : index
    %c0_39 = arith.constant 0 : index
    %c0_40 = arith.constant 0 : index
    %91 = vector.load %arg8[%c0_38, %c0_39, %c0_40] : memref<1x8x256xf32, #tpu.memory_space<vmem>>, vector<1x8x256xf32>
    %92 = vector.shape_cast %91 : vector<1x8x256xf32> to vector<8x256xf32>
    %93 = vector.shape_cast %90 : vector<8x256xf32> to vector<1x8x256xf32>
    tpu.vector_store %arg8[%c0_38, %c0_39, %c0_40], %93 {strides = array<i32>} : memref<1x8x256xf32, #tpu.memory_space<vmem>>, vector<1x8x256xf32>,
    return
  }
  func.func @transform_0(%arg0: i32, %arg1: i32) -> (i32, i32) {
    %c0_i32 = arith.constant 0 : i32
    %c0_i32_0 = arith.constant 0 : i32
    %c0_i32_1 = arith.constant 0 : i32
    return %c0_i32, %c0_i32_0 : i32, i32
  }
  func.func @transform_1(%arg0: i32, %arg1: i32) -> (i32, i32) {
    %c1_i32 = arith.constant 1 : i32
    %0 = arith.muli %arg0, %c1_i32 : i32
    %1 = arith.addi %0, %arg1 : i32
    %c0_i32 = arith.constant 0 : i32
    %c0_i32_0 = arith.constant 0 : i32
    return %1, %c0_i32 : i32, i32
  }
  func.func @transform_2(%arg0: i32, %arg1: i32) -> (i32, i32) {
    %c1_i32 = arith.constant 1 : i32
    %0 = arith.muli %arg0, %c1_i32 : i32
    %1 = arith.addi %0, %arg1 : i32
    %c0_i32 = arith.constant 0 : i32
    %c0_i32_0 = arith.constant 0 : i32
    return %1, %c0_i32 : i32, i32
  }
  func.func @transform_3(%arg0: i32, %arg1: i32) -> (i32, i32) {
    %c1_i32 = arith.constant 1 : i32
    %0 = arith.muli %arg0, %c1_i32 : i32
    %1 = arith.addi %0, %arg1 : i32
    %c0_i32 = arith.constant 0 : i32
    %c0_i32_0 = arith.constant 0 : i32
    return %1, %c0_i32 : i32, i32
  }
  func.func @transform_4(%arg0: i32, %arg1: i32) -> (i32, i32) {
    %c1_i32 = arith.constant 1 : i32
    %0 = arith.muli %arg0, %c1_i32 : i32
    %1 = arith.addi %0, %arg1 : i32
    %c0_i32 = arith.constant 0 : i32
    %c0_i32_0 = arith.constant 0 : i32
    return %1, %c0_i32 : i32, i32
  }
  func.func @transform_5(%arg0: i32, %arg1: i32) -> (i32, i32) {
    %c1_i32 = arith.constant 1 : i32
    %0 = arith.muli %arg0, %c1_i32 : i32
    %1 = arith.addi %0, %arg1 : i32
    %c0_i32 = arith.constant 0 : i32
    %c0_i32_0 = arith.constant 0 : i32
    return %1, %c0_i32 : i32, i32
  }
  func.func @transform_6(%arg0: i32, %arg1: i32) -> (i32, i32, i32) {
    %c0_i32 = arith.constant 0 : i32
    %c0_i32_0 = arith.constant 0 : i32
    %c0_i32_1 = arith.constant 0 : i32
    return %arg0, %c0_i32, %c0_i32_0 : i32, i32, i32
  }
}

</mosaic_0001>

<llo_original>
// kernel: tpu_custom_call.1
$region0: #{tpu_custom_call.1}
  #allocation0 [shape = 'u32[]', space=smem, size = 0x4, offset = 0x4, fixed_abs, tag = 'smem constant byte address 0x4 - core index']
  #allocation1 [shape = 'u32[144,128]{1,0:T(1,128)}', space=vmem, size = 0x12000, scoped, tag = 'internal scratch']
  %s0 = inlined_call_operand.hbm [shape: f32[1,256], index: 0, kind: input, shape index: {}]
  %s1 = inlined_call_operand.hbm [shape: f32[8,256], index: 1, kind: input, shape index: {}]
  %s2 = inlined_call_operand.hbm [shape: f32[8,256], index: 2, kind: input, shape index: {}]
  %s3 = inlined_call_operand.hbm [shape: f32[8,256], index: 3, kind: input, shape index: {}]
  %s4 = inlined_call_operand.hbm [shape: f32[8,256], index: 4, kind: input, shape index: {}]
  %s5 = inlined_call_operand.hbm [shape: f32[8,256], index: 5, kind: input, shape index: {}]
  %s6 = inlined_call_operand.hbm [shape: f32[1,8,256], index: 6, kind: output, shape index: {}]
  %s7 = sld [smem:[#allocation0]]
  $region62: #{tpu_custom_call.1} parent=0
    _
  %s9 = ssub.s32 1, %s7
  %s10 = scalar_select 0, %s9, %s7
  $region1: #{tpu_custom_call.1} parent=0
    #allocation2 [shape = 'u8[1024]{0}', space=vmem, size = 0x400, scoped, tag = 'input window, operand 0, single buffered']
    #allocation3 [shape = 's32[1]{0}', space=sflag, size = 0x4, scoped, tag = 'scoped memory for tpu_custom_call.1']
    #allocation4 [shape = 's32[1]{0}', space=sflag, size = 0x4, scoped, tag = 'scoped memory for tpu_custom_call.1']
    #allocation5 [shape = 'u8[8192]{0}', space=vmem, size = 0x2000, scoped, tag = 'input window, operand 1, single buffered']
    #allocation6 [shape = 's32[1]{0}', space=sflag, size = 0x4, scoped, tag = 'scoped memory for tpu_custom_call.1']
    #allocation7 [shape = 'u8[8192]{0}', space=vmem, size = 0x2000, scoped, tag = 'input window, operand 2, single buffered']
    #allocation8 [shape = 'u8[8192]{0}', space=vmem, size = 0x2000, scoped, tag = 'input window, operand 3, single buffered']
    #allocation9 [shape = 's32[1]{0}', space=sflag, size = 0x4, scoped, tag = 'scoped memory for tpu_custom_call.1']
    #allocation10 [shape = 'u8[8192]{0}', space=vmem, size = 0x2000, scoped, tag = 'input window, operand 4, single buffered']
    #allocation11 [shape = 'u8[8192]{0}', space=vmem, size = 0x2000, scoped, tag = 'input window, operand 5, single buffered']
    #allocation12 [shape = 's32[1]{0}', space=sflag, size = 0x4, scoped, tag = 'scoped memory for tpu_custom_call.1']
    #allocation13 [shape = 'u8[8192]{0}', space=vmem, size = 0x2000, scoped, tag = 'output window, operand 0, single buffered']
    %11 = vsyncpa [#allocation3], 0
    %12 = vsyncpa [#allocation6], 0
    %13 = vsyncpa [#allocation9], 0
    %14 = vsyncpa [#allocation12], 0
    %15 = vsyncpa [#allocation4], 0
    // Predicated region
    $region2: #{tpu_custom_call.1} parent=1 // pred_check
      _
    $region3: #{tpu_custom_call.1} parent=1 // pred_check_branch
      %17 = sbr.rel (0) target = $region5
    $region4: #{tpu_custom_call.1} parent=1 // pred_region
      %s19 = ssub.s32 32, 32
      %20 = vsyncadd [#allocation3], %s19
      %s22 = sshll.u32 [#allocation2], 4
      %s23 = int_to_ptr.vmem [resolvable:$true] %s22
      %25 = dma.hbm_to_vmem [thread:$0]  %s0, 32, %s23, [#allocation3]
    $region5: #{tpu_custom_call.1} parent=1 // pred_fallthru
      _
    // Predicated region
    $region6: #{tpu_custom_call.1} parent=1 // pred_check
      _
    $region7: #{tpu_custom_call.1} parent=1 // pred_check_branch
      %27 = sbr.rel (0) target = $region9
    $region8: #{tpu_custom_call.1} parent=1 // pred_region
      %s28 = sadd.s32 0, 0
      %s30 = ssub.s32 256, 256
      %31 = vsyncadd [#allocation6], %s30
      %s32 = smul.addr %s28, 2
      %s33 = smul.addr %s32, 128
      %s34 = scalar_lea.hbm %s1, %s33
      %s36 = sshll.u32 [#allocation5], 4
      %s37 = int_to_ptr.vmem [resolvable:$true] %s36
      %39 = dma.hbm_to_vmem [thread:$0]  %s34, 256, %s37, [#allocation6]
    $region9: #{tpu_custom_call.1} parent=1 // pred_fallthru
      _
    // Predicated region
    $region10: #{tpu_custom_call.1} parent=1 // pred_check
      _
    $region11: #{tpu_custom_call.1} parent=1 // pred_check_branch
      %41 = sbr.rel (0) target = $region13
    $region12: #{tpu_custom_call.1} parent=1 // pred_region
      %s42 = sadd.s32 0, 0
      %s44 = ssub.s32 256, 256
      %45 = vsyncadd [#allocation6], %s44
      %s46 = smul.addr %s42, 2
      %s47 = smul.addr %s46, 128
      %s48 = scalar_lea.hbm %s2, %s47
      %s50 = sshll.u32 [#allocation7], 4
      %s51 = int_to_ptr.vmem [resolvable:$true] %s50
      %53 = dma.hbm_to_vmem [thread:$0]  %s48, 256, %s51, [#allocation6]
    $region13: #{tpu_custom_call.1} parent=1 // pred_fallthru
      _
    // Predicated region
    $region14: #{tpu_custom_call.1} parent=1 // pred_check
      _
    $region15: #{tpu_custom_call.1} parent=1 // pred_check_branch
      %55 = sbr.rel (0) target = $region17
    $region16: #{tpu_custom_call.1} parent=1 // pred_region
      %s56 = sadd.s32 0, 0
      %s58 = ssub.s32 256, 256
      %59 = vsyncadd [#allocation9], %s58
      %s60 = smul.addr %s56, 2
      %s61 = smul.addr %s60, 128
      %s62 = scalar_lea.hbm %s3, %s61
      %s64 = sshll.u32 [#allocation8], 4
      %s65 = int_to_ptr.vmem [resolvable:$true] %s64
      %67 = dma.hbm_to_vmem [thread:$0]  %s62, 256, %s65, [#allocation9]
    $region17: #{tpu_custom_call.1} parent=1 // pred_fallthru
      _
    // Predicated region
    $region18: #{tpu_custom_call.1} parent=1 // pred_check
      _
    $region19: #{tpu_custom_call.1} parent=1 // pred_check_branch
      %69 = sbr.rel (0) target = $region21
    $region20: #{tpu_custom_call.1} parent=1 // pred_region
      %s70 = sadd.s32 0, 0
      %s72 = ssub.s32 256, 256
      %73 = vsyncadd [#allocation9], %s72
      %s74 = smul.addr %s70, 2
      %s75 = smul.addr %s74, 128
      %s76 = scalar_lea.hbm %s4, %s75
      %s78 = sshll.u32 [#allocation10], 4
      %s79 = int_to_ptr.vmem [resolvable:$true] %s78
      %81 = dma.hbm_to_vmem [thread:$0]  %s76, 256, %s79, [#allocation9]
    $region21: #{tpu_custom_call.1} parent=1 // pred_fallthru
      _
    // Predicated region
    $region22: #{tpu_custom_call.1} parent=1 // pred_check
      _
    $region23: #{tpu_custom_call.1} parent=1 // pred_check_branch
      %83 = sbr.rel (0) target = $region25
    $region24: #{tpu_custom_call.1} parent=1 // pred_region
      %s84 = sadd.s32 0, 0
      %s86 = ssub.s32 256, 256
      %87 = vsyncadd [#allocation12], %s86
      %s88 = smul.addr %s84, 2
      %s89 = smul.addr %s88, 128
      %s90 = scalar_lea.hbm %s5, %s89
      %s92 = sshll.u32 [#allocation11], 4
      %s93 = int_to_ptr.vmem [resolvable:$true] %s92
      %95 = dma.hbm_to_vmem [thread:$0]  %s90, 256, %s93, [#allocation12]
    $region25: #{tpu_custom_call.1} parent=1 // pred_fallthru
      _
    // Predicated region
    $region26: #{tpu_custom_call.1} parent=1 // pred_check
      _
    $region27: #{tpu_custom_call.1} parent=1 // pred_check_branch
      %97 = sbr.rel (0) target = $region29
    $region28: #{tpu_custom_call.1} parent=1 // pred_region
      %98 = dma.done [#allocation3], 32
    $region29: #{tpu_custom_call.1} parent=1 // pred_fallthru
      _
    // Predicated region
    $region30: #{tpu_custom_call.1} parent=1 // pred_check
      _
    $region31: #{tpu_custom_call.1} parent=1 // pred_check_branch
      %100 = sbr.rel (0) target = $region33
    $region32: #{tpu_custom_call.1} parent=1 // pred_region
      %101 = dma.done [#allocation6], 256
    $region33: #{tpu_custom_call.1} parent=1 // pred_fallthru
      _
    // Predicated region
    $region34: #{tpu_custom_call.1} parent=1 // pred_check
      _
    $region35: #{tpu_custom_call.1} parent=1 // pred_check_branch
      %103 = sbr.rel (0) target = $region37
    $region36: #{tpu_custom_call.1} parent=1 // pred_region
      %104 = dma.done [#allocation6], 256
    $region37: #{tpu_custom_call.1} parent=1 // pred_fallthru
      _
    // Predicated region
    $region38: #{tpu_custom_call.1} parent=1 // pred_check
      _
    $region39: #{tpu_custom_call.1} parent=1 // pred_check_branch
      %106 = sbr.rel (0) target = $region41
    $region40: #{tpu_custom_call.1} parent=1 // pred_region
      %107 = dma.done [#allocation9], 256
    $region41: #{tpu_custom_call.1} parent=1 // pred_fallthru
      _
    // Predicated region
    $region42: #{tpu_custom_call.1} parent=1 // pred_check
      _
    $region43: #{tpu_custom_call.1} parent=1 // pred_check_branch
      %109 = sbr.rel (0) target = $region45
    $region44: #{tpu_custom_call.1} parent=1 // pred_region
      %110 = dma.done [#allocation9], 256
    $region45: #{tpu_custom_call.1} parent=1 // pred_fallthru
      _
    // Predicated region
    $region46: #{tpu_custom_call.1} parent=1 // pred_check
      _
    $region47: #{tpu_custom_call.1} parent=1 // pred_check_branch
      %112 = sbr.rel (0) target = $region49
    $region48: #{tpu_custom_call.1} parent=1 // pred_region
      %113 = dma.done [#allocation12], 256
    $region49: #{tpu_custom_call.1} parent=1 // pred_fallthru
      _
    %s114 = sadd.s32 0, 0
    %s115 = sadd.s32 0, 0
    %s116 = sadd.s32 0, 0
    %s117 = sadd.s32 0, 0
    %s118 = sadd.s32 0, 0
    %p119 = scmp.eq.s32.totalorder 0, 0
    // Predicated region
    $region50: #{tpu_custom_call.1} parent=1 // pred_check
      %p120 = pneg %p119
    $region51: #{tpu_custom_call.1} parent=1 // pred_check_branch
      %122 = sbr.rel (%p120) target = $region53
    $region52: #{tpu_custom_call.1} parent=1 // pred_region
      %123 = vst [vmem:[#allocation13] sm:$0xff] 0.0
      %124 = vst [vmem:[#allocation13 + $0x8] sm:$0xff] 0.0
    $region53: #{tpu_custom_call.1} parent=1 // pred_fallthru
      _
    %v125 = vld [vmem:[#allocation5] sm:$0xff]
    %v126 = vld [vmem:[#allocation5 + $0x8] sm:$0xff]
    %v127 = vld [vmem:[#allocation7] sm:$0xff]
    %v128 = vld [vmem:[#allocation7 + $0x8] sm:$0xff]
    %v129 = vld [vmem:[#allocation8] sm:$0xff]
    %v130 = vld [vmem:[#allocation8 + $0x8] sm:$0xff]
    %v131 = vld [vmem:[#allocation10] sm:$0xff]
    %v132 = vld [vmem:[#allocation10 + $0x8] sm:$0xff]
    %v133 = vld [vmem:[#allocation11] sm:$0xff]
    %v134 = vld [vmem:[#allocation11 + $0x8] sm:$0xff]
    %v135 = vsub.f32 %v129, %v127
    %v136 = vsub.f32 %v130, %v128
    %v137 = vsub.f32 %v135, %v131
    %v138 = vsub.f32 %v136, %v132
    %v139 = vadd.f32 %v137, %v133
    %v140 = vadd.f32 %v138, %v134
    %v141 = vmul.f32 %v135, %v135
    %v142 = vmul.f32 %v136, %v136
    %v143 = vmul.f32 %v141, 0.00048828125
    %v144 = vmul.f32 %v142, 0.00048828125
    %v145 = vmul.f32 %v139, %v139
    %v146 = vmul.f32 %v140, %v140
    %v147 = vmul.f32 %v145, 0.00048828125
    %v148 = vmul.f32 %v146, 0.00048828125
    %v149 = vadd.f32 %v143, %v147
    %v150 = vadd.f32 %v144, %v148
    %151 = vrot.lane.b32.xlu0 %v125, 1
    %v152 = vpop.permute.xlu0 %151
    %153 = vrot.lane.b32.xlu0 %v126, 1
    %v154 = vpop.permute.xlu0 %153
    %v155 = vlaneseq
    %v156 = vand.u32 %v155, 127
    %vm157 = vcmp.lt.s32.totalorder %v156, 1
    %v158 = vsel %vm157, %v152, %v154
    %v159 = vsel %vm157, %v154, %v152
    %v160 = vadd.f32 %v125, %v159
    %v161 = vadd.f32 %v126, %v158
    %162 = vrot.lane.b32.xlu0 %v125, 127
    %v163 = vpop.permute.xlu0 %162
    %164 = vrot.lane.b32.xlu0 %v126, 127
    %v165 = vpop.permute.xlu0 %164
    %vm166 = vcmp.lt.s32.totalorder %v156, 127
    %v167 = vsel %vm166, %v163, %v165
    %v168 = vsel %vm166, %v165, %v163
    %v169 = vadd.f32 %v160, %v167
    %v170 = vadd.f32 %v161, %v168
    %171 = vrot.lane.b32.xlu0 %v169, 16
    %v172 = vpop.permute.xlu0 %171
    %173 = vrot.lane.b32.xlu0 %v170, 16
    %v174 = vpop.permute.xlu0 %173
    %vm175 = vcmp.lt.s32.totalorder %v156, 16
    %v176 = vsel %vm175, %v172, %v174
    %v177 = vsel %vm175, %v174, %v172
    %v178 = vadd.f32 %v169, %v177
    %v179 = vadd.f32 %v170, %v176
    %180 = vrot.lane.b32.xlu0 %v169, 112
    %v181 = vpop.permute.xlu0 %180
    %182 = vrot.lane.b32.xlu0 %v170, 112
    %v183 = vpop.permute.xlu0 %182
    %vm184 = vcmp.lt.s32.totalorder %v156, 112
    %v185 = vsel %vm184, %v181, %v183
    %v186 = vsel %vm184, %v183, %v181
    %v187 = vadd.f32 %v178, %v185
    %v188 = vadd.f32 %v179, %v186
    %189 = vrot.lane.b32.xlu0 %v127, 1
    %v190 = vpop.permute.xlu0 %189
    %191 = vrot.lane.b32.xlu0 %v128, 1
    %v192 = vpop.permute.xlu0 %191
    %v193 = vsel %vm157, %v190, %v192
    %v194 = vsel %vm157, %v192, %v190
    %v195 = vadd.f32 %v127, %v194
    %v196 = vadd.f32 %v128, %v193
    %197 = vrot.lane.b32.xlu0 %v127, 127
    %v198 = vpop.permute.xlu0 %197
    %199 = vrot.lane.b32.xlu0 %v128, 127
    %v200 = vpop.permute.xlu0 %199
    %v201 = vsel %vm166, %v198, %v200
    %v202 = vsel %vm166, %v200, %v198
    %v203 = vadd.f32 %v195, %v201
    %v204 = vadd.f32 %v196, %v202
    %205 = vrot.lane.b32.xlu0 %v203, 16
    %v206 = vpop.permute.xlu0 %205
    %207 = vrot.lane.b32.xlu0 %v204, 16
    %v208 = vpop.permute.xlu0 %207
    %v209 = vsel %vm175, %v206, %v208
    %v210 = vsel %vm175, %v208, %v206
    %v211 = vadd.f32 %v203, %v210
    %v212 = vadd.f32 %v204, %v209
    %213 = vrot.lane.b32.xlu0 %v203, 112
    %v214 = vpop.permute.xlu0 %213
    %215 = vrot.lane.b32.xlu0 %v204, 112
    %v216 = vpop.permute.xlu0 %215
    %v217 = vsel %vm184, %v214, %v216
    %v218 = vsel %vm184, %v216, %v214
    %v219 = vadd.f32 %v211, %v217
    %v220 = vadd.f32 %v212, %v218
    %v221 = vmul.f32 %v125, %v125
    %v222 = vmul.f32 %v126, %v126
    %v223 = vmul.f32 %v127, %v127
    %v224 = vmul.f32 %v128, %v128
    %v225 = vadd.f32 %v221, %v223
    %v226 = vadd.f32 %v222, %v224
    %227 = vrot.lane.b32.xlu0 %v225, 1
    %v228 = vpop.permute.xlu0 %227
    %229 = vrot.lane.b32.xlu0 %v226, 1
    %v230 = vpop.permute.xlu0 %229
    %v231 = vsel %vm157, %v228, %v230
    %v232 = vsel %vm157, %v230, %v228
    %v233 = vadd.f32 %v225, %v232
    %v234 = vadd.f32 %v226, %v231
    %235 = vrot.lane.b32.xlu0 %v225, 127
    %v236 = vpop.permute.xlu0 %235
    %237 = vrot.lane.b32.xlu0 %v226, 127
    %v238 = vpop.permute.xlu0 %237
    %v239 = vsel %vm166, %v236, %v238
    %v240 = vsel %vm166, %v238, %v236
    %v241 = vadd.f32 %v233, %v239
    %v242 = vadd.f32 %v234, %v240
    %243 = vrot.lane.b32.xlu0 %v241, 16
    %v244 = vpop.permute.xlu0 %243
    %245 = vrot.lane.b32.xlu0 %v242, 16
    %v246 = vpop.permute.xlu0 %245
    %v247 = vsel %vm175, %v244, %v246
    %v248 = vsel %vm175, %v246, %v244
    %v249 = vadd.f32 %v241, %v248
    %v250 = vadd.f32 %v242, %v247
    %251 = vrot.lane.b32.xlu0 %v241, 112
    %v252 = vpop.permute.xlu0 %251
    %253 = vrot.lane.b32.xlu0 %v242, 112
    %v254 = vpop.permute.xlu0 %253
    %v255 = vsel %vm184, %v252, %v254
    %v256 = vsel %vm184, %v254, %v252
    %v257 = vadd.f32 %v249, %v255
    %v258 = vadd.f32 %v250, %v256
    %v259 = vmul.f32 %v125, %v127
    %v260 = vmul.f32 %v126, %v128
    %261 = vrot.lane.b32.xlu0 %v259, 1
    %v262 = vpop.permute.xlu0 %261
    %263 = vrot.lane.b32.xlu0 %v260, 1
    %v264 = vpop.permute.xlu0 %263
    %v265 = vsel %vm157, %v262, %v264
    %v266 = vsel %vm157, %v264, %v262
    %v267 = vadd.f32 %v259, %v266
    %v268 = vadd.f32 %v260, %v265
    %269 = vrot.lane.b32.xlu0 %v259, 127
    %v270 = vpop.permute.xlu0 %269
    %271 = vrot.lane.b32.xlu0 %v260, 127
    %v272 = vpop.permute.xlu0 %271
    %v273 = vsel %vm166, %v270, %v272
    %v274 = vsel %vm166, %v272, %v270
    %v275 = vadd.f32 %v267, %v273
    %v276 = vadd.f32 %v268, %v274
    %277 = vrot.lane.b32.xlu0 %v275, 16
    %v278 = vpop.permute.xlu0 %277
    %279 = vrot.lane.b32.xlu0 %v276, 16
    %v280 = vpop.permute.xlu0 %279
    %v281 = vsel %vm175, %v278, %v280
    %v282 = vsel %vm175, %v280, %v278
    %v283 = vadd.f32 %v275, %v282
    %v284 = vadd.f32 %v276, %v281
    %285 = vrot.lane.b32.xlu0 %v275, 112
    %v286 = vpop.permute.xlu0 %285
    %287 = vrot.lane.b32.xlu0 %v276, 112
    %v288 = vpop.permute.xlu0 %287
    %v289 = vsel %vm184, %v286, %v288
    %v290 = vsel %vm184, %v288, %v286
    %v291 = vadd.f32 %v283, %v289
    %v292 = vadd.f32 %v284, %v290
    %v293 = vmul.f32 %v187, %v219
    %v294 = vmul.f32 %v188, %v220
    %v295 = vmul.f32 %v187, %v187
    %v296 = vmul.f32 %v188, %v188
    %v297 = vmul.f32 %v219, %v219
    %v298 = vmul.f32 %v220, %v220
    %v299 = vadd.f32 %v295, %v297
    %v300 = vadd.f32 %v296, %v298
    %v301 = vmul.f32 %v293, 2.0
    %v302 = vmul.f32 %v294, 2.0
    %v303 = vadd.f32 %v301, 0.0081
    %v304 = vadd.f32 %v302, 0.0081
    %v305 = vmul.f32 %v291, 9.0
    %v306 = vmul.f32 %v292, 9.0
    %v307 = vsub.f32 %v305, %v293
    %v308 = vsub.f32 %v306, %v294
    %v309 = vmul.f32 %v307, 2.0
    %v310 = vmul.f32 %v308, 2.0
    %v311 = vadd.f32 %v309, 0.0648
    %v312 = vadd.f32 %v310, 0.0648
    %v313 = vmul.f32 %v303, %v311
    %v314 = vmul.f32 %v304, %v312
    %v315 = vadd.f32 %v299, 0.0081
    %v316 = vadd.f32 %v300, 0.0081
    %v317 = vmul.f32 %v257, 9.0
    %v318 = vmul.f32 %v258, 9.0
    %v319 = vsub.f32 %v317, %v299
    %v320 = vsub.f32 %v318, %v300
    %v321 = vadd.f32 %v319, 0.0648
    %v322 = vadd.f32 %v320, 0.0648
    %v323 = vmul.f32 %v315, %v321
    %v324 = vmul.f32 %v316, %v322
    %v325 = vrcp.pop %v323
    %v326 = vrcp.pop %v324
    %v327 = vmul.f32 %v313, %v325
    %v328 = vmul.f32 %v314, %v326
    %v329 = vld [vmem:[#allocation2] sm:$0x3]
    %v331 = vlaneseq
    %v332 = vshrl.u32 %v331, 7
    %v333 = vsub.s32 0, %v332
    %v334 = vrot.slane %v329, %v333
    %v335 = vlaneseq
    %v336 = vshrl.u32 %v335, 7
    %v337 = vsub.s32 1, %v336
    %v338 = vrot.slane %v329, %v337
    %v341 = vmul.f32 %v327, %v334
    %v342 = vmul.f32 %v328, %v338
    %v343 = vmul.f32 %v341, 0.00031887754
    %v344 = vmul.f32 %v342, 0.00031887754
    %v345 = vsub.f32 %v149, %v343
    %v346 = vsub.f32 %v150, %v344
    %v347 = vld [vmem:[#allocation13] sm:$0xff]
    %v348 = vld [vmem:[#allocation13 + $0x8] sm:$0xff]
    %v349 = vadd.f32 %v345, 0.0
    %v350 = vadd.f32 %v346, 0.0
    %v351 = vadd.f32 %v347, %v349
    %v352 = vadd.f32 %v348, %v350
    %353 = vst [vmem:[#allocation13] sm:$0xff] %v351
    %354 = vst [vmem:[#allocation13 + $0x8] sm:$0xff] %v352
    // Predicated region
    $region54: #{tpu_custom_call.1} parent=1 // pred_check
      _
    $region55: #{tpu_custom_call.1} parent=1 // pred_check_branch
      %356 = sbr.rel (0) target = $region57
    $region56: #{tpu_custom_call.1} parent=1 // pred_region
      %s358 = ssub.s32 256, 256
      %359 = vsyncadd [#allocation4], %s358
      %s361 = sshll.u32 [#allocation13], 4
      %s362 = int_to_ptr.vmem [resolvable:$true] %s361
      %364 = dma.vmem_to_hbm [thread:$0]  %s362, 256, %s6, [#allocation4]
    $region57: #{tpu_custom_call.1} parent=1 // pred_fallthru
      _
    // Predicated region
    $region58: #{tpu_custom_call.1} parent=1 // pred_check
      _
    $region59: #{tpu_custom_call.1} parent=1 // pred_check_branch
      %366 = sbr.rel (0) target = $region61
    $region60: #{tpu_custom_call.1} parent=1 // pred_region
      %367 = dma.done [#allocation4], 256
    $region61: #{tpu_custom_call.1} parent=1 // pred_fallthru
      _
    %368 = vsyncpa [#allocation3], 1
    %369 = vsyncpa [#allocation6], 1
    %370 = vsyncpa [#allocation9], 1
    %371 = vsyncpa [#allocation12], 1
    %372 = vsyncpa [#allocation4], 1

</llo_original>
